<compile_context>
chip_gen: v7x
topology: tpu7x:2x2x1
jax: 0.10.0
libtpu: 0.0.40
codegen_flags: <defaults>
</compile_context>

<pallas_src>
import functools

import jax
import jax.numpy as jnp
import numpy as np
from jax.experimental import pallas as pl
from jax.experimental.pallas import tpu as pltpu


# ----------------------------- Pallas kernels -------------------------------

def _fused_kernel_single(at_ref, wct_ref, cb_ref, m1t_ref, w2t_ref, b2_ref, o_ref):
    """Whole problem in one invocation (no grid, no scratch).

    at_ref  : (K, M)   im2col, transposed (M lane-dense)
    wct_ref : (F, K)   conv weights
    cb_ref  : (F, 1)   conv bias (broadcast over lanes)
    m1t_ref : (M, B)   fused avg-pool + fc1 + group-mean matrix
    w2t_ref : (C, F)   fc2 weight, transposed
    b2_ref  : (C, 1)   fc2 bias (+ folded fc1 bias)
    o_ref   : (C, B)   logits, transposed
    """
    conv_t = jnp.dot(wct_ref[...], at_ref[...],
                     preferred_element_type=jnp.float32)            # (F, M)
    conv_t = jnp.maximum(conv_t + cb_ref[...], 0.0)                 # lane-dense ReLU
    acc_t = jnp.dot(conv_t, m1t_ref[...],
                    preferred_element_type=jnp.float32)             # (F, B)
    o_ref[...] = (jnp.dot(w2t_ref[...], acc_t,
                          preferred_element_type=jnp.float32)
                  + b2_ref[...])                                     # (C, B)


def _fused_kernel_tiled(at_ref, wct_ref, cb_ref, m1t_ref, w2t_ref, b2_ref,
                        o_ref, acc_ref):
    """Reduction over M tiles (only used when M exceeds the tile cap)."""
    @pl.when(pl.program_id(0) == 0)
    def _():
        acc_ref[...] = jnp.zeros_like(acc_ref)

    conv_t = jnp.dot(wct_ref[...], at_ref[...],
                     preferred_element_type=jnp.float32)             # (F, tm)
    conv_t = jnp.maximum(conv_t + cb_ref[...], 0.0)
    acc_ref[...] += jnp.dot(conv_t, m1t_ref[...],
                            preferred_element_type=jnp.float32)      # (F, B)

    @pl.when(pl.program_id(0) == pl.num_programs(0) - 1)
    def _():
        o_ref[...] = (jnp.dot(w2t_ref[...], acc_ref[...],
                              preferred_element_type=jnp.float32)
                      + b2_ref[...])


# ------------------------------ wrapper -------------------------------------

def fused_forward(a_t, wc_t, cb, m1_t, w2_t, b2, *, tile_m_cap=4096):
    """Returns transposed logits (C, B)."""
    K, M = a_t.shape
    F = wc_t.shape[0]
    C = w2_t.shape[0]
    B = m1_t.shape[1]

    cost = pl.CostEstimate(
        flops=2 * M * K * F + 2 * M * B * F + 2 * B * F * C,
        transcendentals=0,
        bytes_accessed=4 * (M * K + M * B + K * F + F + F * C + C + C * B),
    )

    if M <= tile_m_cap:
        # Single invocation, whole arrays resident in VMEM (~<1 MiB here).
        vmem = pl.BlockSpec(memory_space=pltpu.MemorySpace.VMEM)
        return pl.pallas_call(
            _fused_kernel_single,
            out_shape=jax.ShapeDtypeStruct((C, B), jnp.float32),
            in_specs=[vmem] * 6,
            out_specs=vmem,
            cost_estimate=cost,
        )(a_t, wc_t, cb, m1_t, w2_t, b2)

    # --- large-M fallback: pad M up to a multiple of a 128-aligned tile.
    # Zero im2col columns are harmless: the matching m1_t rows are zero, so
    # relu(0 + bias) * 0 contributes nothing (exact).
    assert tile_m_cap % 128 == 0, "tile_m_cap must be a multiple of 128"
    tm = tile_m_cap
    m_pad = ((M + tm - 1) // tm) * tm
    if m_pad != M:
        a_t = jnp.pad(a_t, ((0, 0), (0, m_pad - M)))
        m1_t = jnp.pad(m1_t, ((0, m_pad - M), (0, 0)))
    n_steps = m_pad // tm

    return pl.pallas_call(
        _fused_kernel_tiled,
        out_shape=jax.ShapeDtypeStruct((C, B), jnp.float32),
        grid=(n_steps,),
        in_specs=[
            pl.BlockSpec((K, tm), lambda i: (0, i)),   # im2col slab (pipelined)
            pl.BlockSpec((F, K), lambda i: (0, 0)),    # conv weights (invariant)
            pl.BlockSpec((F, 1), lambda i: (0, 0)),    # conv bias
            pl.BlockSpec((tm, B), lambda i: (i, 0)),   # pool+fc1+mean matrix
            pl.BlockSpec((C, F), lambda i: (0, 0)),    # fc2 weight
            pl.BlockSpec((C, 1), lambda i: (0, 0)),    # effective fc2 bias
        ],
        out_specs=pl.BlockSpec((C, B), lambda i: (0, 0)),
        scratch_shapes=[pltpu.VMEM((F, B), jnp.float32)],
        compiler_params=pltpu.CompilerParams(
            dimension_semantics=("arbitrary",),        # pure reduction axis
            vmem_limit_bytes=32 * 1024 * 1024),
        cost_estimate=cost,
    )(a_t, wc_t, cb, m1_t, w2_t, b2)


# ------------------------------- JAX glue ------------------------------------

def group_transformed_input(x, symmetry_group):
    if symmetry_group is None or symmetry_group == '':
        return [x]
    if symmetry_group == 'rot90':
        return [jnp.rot90(x, k=i, axes=(2, 3)) for i in range(4)]
    if symmetry_group == 'hflip':
        return [x, jnp.flip(x, axis=3)]
    if symmetry_group == 'vflip':
        return [x, jnp.flip(x, axis=2)]
    raise NotImplementedError(symmetry_group)


def im2col_T(x):
    """x: (N, C, H, W) -> (9*C, N*H*W); row k = (di*3+dj)*C + c, col m = n*H*W+h*W+w."""
    N, C, H, W = x.shape
    xp = jnp.pad(x, ((0, 0), (0, 0), (1, 1), (1, 1)))       # (N, C, H+2, W+2)
    patches = [xp[:, :, di:di + H, dj:dj + W]
               for di in range(3) for dj in range(3)]
    a = jnp.stack(patches, axis=0)                           # (9, N, C, H, W)
    a = jnp.transpose(a, (0, 2, 1, 3, 4))                    # (9, C, N, H, W)
    return a.reshape(9 * C, N * H * W)


def equicnn_forward(x, params, symmetry_group='rot90', tile_m_cap=4096):
    """Pallas implementation of Equi0FTCNN.forward (training / group-mean path)."""
    xs = group_transformed_input(x, symmetry_group)
    G = len(xs)
    B, Cin, H, W = x.shape
    xg = jnp.stack(xs, axis=0).reshape(G * B, Cin, H, W)

    a_t = im2col_T(xg)                                       # (9*Cin, M), M=G*B*H*W
    F = params['conv_w'].shape[0]
    wc_t = jnp.transpose(params['conv_w'], (0, 2, 3, 1)).reshape(F, -1)   # (F, 9*Cin)
    cb = params['conv_b'][:, None]                           # (F, 1)

    # --- fold 2x2 avg-pool + fc1 + group-mean into one (M, B) matrix (exact:
    #     pool/fc1/mean are linear and fc1 has no activation).
    HW = H * W
    Hp, Wp = H // 2, W // 2
    w1e = params['fc1_w'][:, 0].reshape(Hp, Wp)
    w1e = jnp.repeat(jnp.repeat(w1e, 2, axis=0), 2, axis=1) / 4.0          # (H, W)
    w1e = w1e.reshape(HW)
    m1t = (jnp.eye(B, dtype=jnp.float32)[None, :, None, :]                 # (1,B,1,B)
           * (w1e / G)[None, None, :, None])                               # (1,1,HW,1)
    m1t = jnp.broadcast_to(m1t, (G, B, HW, B)).reshape(G * B * HW, B)      # (M, B)

    # --- fold fc1 bias through fc2 into an effective fc2 bias (exact).
    w2_t = params['fc2_w'].T                                                # (C, F)
    b2_eff = (params['fc2_b']
              + params['fc1_b'][0] * jnp.sum(params['fc2_w'], axis=0))[:, None]  # (C, 1)

    out_t = fused_forward(a_t, wc_t, cb, m1t, w2_t, b2_eff,
                          tile_m_cap=tile_m_cap)                            # (C, B)
    return out_t.T                                                          # (B, C)


def reference_forward(x, params, symmetry_group='rot90'):
    """Pure-JAX reference following the straightforward per-group path."""
    xs = group_transformed_input(x, symmetry_group)
    G = len(xs)
    B, Cin, H, W = x.shape
    xg = jnp.stack(xs, axis=0).reshape(G * B, Cin, H, W)
    conv = jax.lax.conv_general_dilated(
        xg, params['conv_w'], window_strides=(1, 1), padding='SAME',
        dimension_numbers=('NCHW', 'OIHW', 'NCHW'))
    conv = jnp.maximum(conv + params['conv_b'][None, :, None, None], 0.0)  # (N,F,H,W)
    N, F = conv.shape[0], conv.shape[1]
    pooled = conv.reshape(N, F, H // 2, 2, W // 2, 2).mean(axis=(3, 5))
    P = (H // 2) * (W // 2)
    h = pooled.reshape(N * F, P) @ params['fc1_w'] + params['fc1_b'][None, :]
    h = h.reshape(N, F)
    logits = h @ params['fc2_w'] + params['fc2_b'][None, :]
    return logits.reshape(G, B, -1).mean(axis=0)


# --------------------------------- main ---------------------------------------

def init_params(key, cin=3, feat_size=32, pool_hw=6, num_classes=2):
    k0, k1, k2, k3 = jax.random.split(key, 4)
    return {
        'conv_w': 0.1 * jax.random.normal(k0, (feat_size, cin, 3, 3), jnp.float32),
        'conv_b': 0.1 * jax.random.normal(k1, (feat_size,), jnp.float32),
        'fc1_w': 0.1 * jax.random.normal(k2, (pool_hw * pool_hw, 1), jnp.float32),
        'fc1_b': 0.1 * jnp.ones((1,), jnp.float32),
        'fc2_w': 0.1 * jax.random.normal(k3, (feat_size, num_classes), jnp.float32),
        'fc2_b': jnp.zeros((num_classes,), jnp.float32),
    }


if __name__ == "__main__":
    key = jax.random.PRNGKey(0)
    kx, kp = jax.random.split(key)

    # batch=2, channels=3, spatial=12 (pools evenly to 6x6), feat_size=32,
    # num_classes=2, symmetry_group='rot90' (group size 4) => M = 4*2*144 = 1152.
    x = jax.random.normal(kx, (2, 3, 12, 12), jnp.float32)
    params = init_params(kp, cin=3, feat_size=32, pool_hw=6, num_classes=2)

    ref = jax.block_until_ready(reference_forward(x, params, 'rot90'))

    # Default path: single kernel invocation, whole blocks in VMEM.
    fwd = jax.jit(functools.partial(equicnn_forward, symmetry_group='rot90'))
    out = jax.block_until_ready(fwd(x, params))
    assert out.shape == (2, 2), out.shape
    if not np.allclose(np.asarray(out), np.asarray(ref), atol=1e-4, rtol=1e-4):
        raise AssertionError(f"single-step mismatch vs reference:\n{out}\n{ref}")

    # Also exercise the tiled / zero-padded reduction path (used for large M).
    fwd_tiled = jax.jit(functools.partial(equicnn_forward, symmetry_group='rot90',
                                          tile_m_cap=256))
    out_t = jax.block_until_ready(fwd_tiled(x, params))
    if not np.allclose(np.asarray(out_t), np.asarray(ref), atol=1e-4, rtol=1e-4):
        raise AssertionError(f"tiled-path mismatch vs reference:\n{out_t}\n{ref}")

    print("KERNEL_OK")
</pallas_src>

<mosaic_0001>
module attributes {stable_mosaic.version = 11 : i64} {
  func.func @_fused_kernel_single(%arg0: memref<27x1152xf32, #tpu.memory_space<vmem>>, %arg1: memref<32x27xf32, #tpu.memory_space<vmem>>, %arg2: memref<32x1xf32, #tpu.memory_space<vmem>>, %arg3: memref<1152x2xf32, #tpu.memory_space<vmem>>, %arg4: memref<2x32xf32, #tpu.memory_space<vmem>>, %arg5: memref<2x1xf32, #tpu.memory_space<vmem>>, %arg6: memref<2x2xf32, #tpu.memory_space<vmem>>) attributes {dimension_semantics = [], scalar_prefetch = 0 : i64, scratch_operands = 0 : i64, tpu.core_type = #tpu.core_type<tc>} {
    %c0 = arith.constant 0 : index
    %c0_0 = arith.constant 0 : index
    %0 = vector.load %arg1[%c0, %c0_0] : memref<32x27xf32, #tpu.memory_space<vmem>>, vector<32x27xf32>
    %c0_1 = arith.constant 0 : index
    %c0_2 = arith.constant 0 : index
    %1 = vector.load %arg0[%c0_1, %c0_2] : memref<27x1152xf32, #tpu.memory_space<vmem>>, vector<27x1152xf32>
    %cst = arith.constant dense<0.000000e+00> : vector<32x1152xf32>
    %2 = tpu.matmul %0, %1, %cst {dimension_numbers = #tpu.dot_dimension_numbers<[1], [0], [0], [1], [0, 0, 1, 1], [], []>} : vector<32x27xf32>, vector<27x1152xf32>, vector<32x1152xf32> -> vector<32x1152xf32>
    %c0_3 = arith.constant 0 : index
    %c0_4 = arith.constant 0 : index
    %3 = vector.load %arg2[%c0_3, %c0_4] : memref<32x1xf32, #tpu.memory_space<vmem>>, vector<32x1xf32>
    %4 = vector.broadcast %3 : vector<32x1xf32> to vector<32x1152xf32>
    %5 = arith.addf %2, %4 : vector<32x1152xf32>
    %cst_5 = arith.constant 0.000000e+00 : f32
    %6 = vector.broadcast %cst_5 : f32 to vector<32x1152xf32>
    %7 = arith.maximumf %5, %6 : vector<32x1152xf32>
    %c0_6 = arith.constant 0 : index
    %c0_7 = arith.constant 0 : index
    %8 = vector.load %arg3[%c0_6, %c0_7] : memref<1152x2xf32, #tpu.memory_space<vmem>>, vector<1152x2xf32>
    %cst_8 = arith.constant dense<0.000000e+00> : vector<32x2xf32>
    %9 = tpu.matmul %7, %8, %cst_8 {dimension_numbers = #tpu.dot_dimension_numbers<[1], [0], [0], [1], [0, 0, 1, 1], [], []>} : vector<32x1152xf32>, vector<1152x2xf32>, vector<32x2xf32> -> vector<32x2xf32>
    %c0_9 = arith.constant 0 : index
    %c0_10 = arith.constant 0 : index
    %10 = vector.load %arg4[%c0_9, %c0_10] : memref<2x32xf32, #tpu.memory_space<vmem>>, vector<2x32xf32>
    %cst_11 = arith.constant dense<0.000000e+00> : vector<2x2xf32>
    %11 = tpu.matmul %10, %9, %cst_11 {dimension_numbers = #tpu.dot_dimension_numbers<[1], [0], [0], [1], [0, 0, 1, 1], [], []>} : vector<2x32xf32>, vector<32x2xf32>, vector<2x2xf32> -> vector<2x2xf32>
    %c0_12 = arith.constant 0 : index
    %c0_13 = arith.constant 0 : index
    %12 = vector.load %arg5[%c0_12, %c0_13] : memref<2x1xf32, #tpu.memory_space<vmem>>, vector<2x1xf32>
    %13 = vector.broadcast %12 : vector<2x1xf32> to vector<2x2xf32>
    %14 = arith.addf %11, %13 : vector<2x2xf32>
    %c0_14 = arith.constant 0 : index
    %c0_15 = arith.constant 0 : index
    %15 = vector.load %arg6[%c0_14, %c0_15] : memref<2x2xf32, #tpu.memory_space<vmem>>, vector<2x2xf32>
    tpu.vector_store %arg6[%c0_14, %c0_15], %14 {strides = array<i32>} : memref<2x2xf32, #tpu.memory_space<vmem>>, vector<2x2xf32>,
    return
  }
}

</mosaic_0001>

<llo_original>
// kernel: equicnn_forward.1
$region0: #{equicnn_forward.1}
  #allocation0 [shape = 'u32[]', space=smem, size = 0x4, offset = 0x4, fixed_abs, tag = 'smem constant byte address 0x4 - core index']
  #allocation1 [shape = 'u32[144,128]{1,0:T(1,128)}', space=vmem, size = 0x12000, scoped, tag = 'internal scratch']
  %s0 = inlined_call_operand.vmem [shape: f32[27,1152], index: 0, kind: input, shape index: {}]
  %s1 = inlined_call_operand.vmem [shape: f32[32,27], index: 1, kind: input, shape index: {}]
  %s2 = inlined_call_operand.vmem [shape: f32[32,1], index: 2, kind: input, shape index: {}]
  %s3 = inlined_call_operand.vmem [shape: f32[1152,2], index: 3, kind: input, shape index: {}]
  %s4 = inlined_call_operand.vmem [shape: f32[2,32], index: 4, kind: input, shape index: {}]
  %s5 = inlined_call_operand.vmem [shape: f32[2,1], index: 5, kind: input, shape index: {}]
  %s6 = inlined_call_operand.vmem [shape: f32[2,2], index: 6, kind: output, shape index: {}]
  %s7 = sld [smem:[#allocation0]]
  $region34: #{equicnn_forward.1} parent=0
    _
  %s9 = ssub.s32 1, %s7
  %s10 = scalar_select 0, %s9, %s7
  // Predicated region
  $region2: #{equicnn_forward.1} parent=0 // pred_check
    _
  $region3: #{equicnn_forward.1} parent=0 // pred_check_branch
    %12 = sbr.rel (0) target = $region5
  $region4: #{equicnn_forward.1} parent=0 // pred_region
    _
  $region5: #{equicnn_forward.1} parent=0 // pred_fallthru
    _
  // Predicated region
  $region6: #{equicnn_forward.1} parent=0 // pred_check
    _
  $region7: #{equicnn_forward.1} parent=0 // pred_check_branch
    %14 = sbr.rel (0) target = $region9
  $region8: #{equicnn_forward.1} parent=0 // pred_region
    _
  $region9: #{equicnn_forward.1} parent=0 // pred_fallthru
    _
  // Predicated region
  $region10: #{equicnn_forward.1} parent=0 // pred_check
    _
  $region11: #{equicnn_forward.1} parent=0 // pred_check_branch
    %16 = sbr.rel (0) target = $region13
  $region12: #{equicnn_forward.1} parent=0 // pred_region
    _
  $region13: #{equicnn_forward.1} parent=0 // pred_fallthru
    _
  // Predicated region
  $region14: #{equicnn_forward.1} parent=0 // pred_check
    _
  $region15: #{equicnn_forward.1} parent=0 // pred_check_branch
    %18 = sbr.rel (0) target = $region17
  $region16: #{equicnn_forward.1} parent=0 // pred_region
    _
  $region17: #{equicnn_forward.1} parent=0 // pred_fallthru
    _
  // Predicated region
  $region18: #{equicnn_forward.1} parent=0 // pred_check
    _
  $region19: #{equicnn_forward.1} parent=0 // pred_check_branch
    %20 = sbr.rel (0) target = $region21
  $region20: #{equicnn_forward.1} parent=0 // pred_region
    _
  $region21: #{equicnn_forward.1} parent=0 // pred_fallthru
    _
  // Predicated region
  $region22: #{equicnn_forward.1} parent=0 // pred_check
    _
  $region23: #{equicnn_forward.1} parent=0 // pred_check_branch
    %22 = sbr.rel (0) target = $region25
  $region24: #{equicnn_forward.1} parent=0 // pred_region
    _
  $region25: #{equicnn_forward.1} parent=0 // pred_fallthru
    _
  %v23 = vld [vmem:[%s1] sm:$0xff]
  %v24 = vld [vmem:[%s1 + $0x8] sm:$0xff]
  %v25 = vld [vmem:[%s1 + $0x10] sm:$0xff]
  %v26 = vld [vmem:[%s1 + $0x18] sm:$0xff]
  %v27 = vld [vmem:[%s0] sm:$0xff]
  %v28 = vld [vmem:[%s0 + $0x8] sm:$0xff]
  %v29 = vld [vmem:[%s0 + $0x10] sm:$0xff]
  %v30 = vld [vmem:[%s0 + $0x18] sm:$0xff]
  %v31 = vld [vmem:[%s0 + $0x20] sm:$0xff]
  %v32 = vld [vmem:[%s0 + $0x28] sm:$0xff]
  %v33 = vld [vmem:[%s0 + $0x30] sm:$0xff]
  %v34 = vld [vmem:[%s0 + $0x38] sm:$0xff]
  %v35 = vld [vmem:[%s0 + $0x40] sm:$0xff]
  %v36 = vld [vmem:[%s0 + $0x48] sm:$0xff]
  %v37 = vld [vmem:[%s0 + $0x50] sm:$0xff]
  %v38 = vld [vmem:[%s0 + $0x58] sm:$0xff]
  %v39 = vld [vmem:[%s0 + $0x60] sm:$0xff]
  %v40 = vld [vmem:[%s0 + $0x68] sm:$0xff]
  %v41 = vld [vmem:[%s0 + $0x70] sm:$0xff]
  %v42 = vld [vmem:[%s0 + $0x78] sm:$0xff]
  %v43 = vld [vmem:[%s0 + $0x80] sm:$0xff]
  %v44 = vld [vmem:[%s0 + $0x88] sm:$0xff]
  %v45 = vld [vmem:[%s0 + $0x90] sm:$0xff]
  %v46 = vld [vmem:[%s0 + $0x98] sm:$0xff]
  %v47 = vld [vmem:[%s0 + $0xa0] sm:$0xff]
  %v48 = vld [vmem:[%s0 + $0xa8] sm:$0xff]
  %v49 = vld [vmem:[%s0 + $0xb0] sm:$0xff]
  %v50 = vld [vmem:[%s0 + $0xb8] sm:$0xff]
  %v51 = vld [vmem:[%s0 + $0xc0] sm:$0xff]
  %v52 = vld [vmem:[%s0 + $0xc8] sm:$0xff]
  %v53 = vld [vmem:[%s0 + $0xd0] sm:$0xff]
  %v54 = vld [vmem:[%s0 + $0xd8] sm:$0x7]
  %v55 = vld [vmem:[%s0 + $0xe0] sm:$0x7]
  %v56 = vld [vmem:[%s0 + $0xe8] sm:$0x7]
  %v57 = vld [vmem:[%s0 + $0xf0] sm:$0x7]
  %v58 = vld [vmem:[%s0 + $0xf8] sm:$0x7]
  %v59 = vld [vmem:[%s0 + $0x100] sm:$0x7]
  %v60 = vld [vmem:[%s0 + $0x108] sm:$0x7]
  %v61 = vld [vmem:[%s0 + $0x110] sm:$0x7]
  %v62 = vld [vmem:[%s0 + $0x118] sm:$0x7]
  %v63 = vld [vmem:[%s2] sm:$0xff]
  %v64 = vld [vmem:[%s2 + $0x8] sm:$0xff]
  %v65 = vld [vmem:[%s2 + $0x10] sm:$0xff]
  %v66 = vld [vmem:[%s2 + $0x18] sm:$0xff]
  %68 = vset.pattern.permute.xlu0 0
  %69 = vperm.xlu0 %68, %v63
  %v70 = vpop.permute.xlu0 %69
  %73 = vset.pattern.permute.xlu0 0
  %74 = vperm.xlu0 %73, %v64
  %v75 = vpop.permute.xlu0 %74
  %78 = vset.pattern.permute.xlu0 0
  %79 = vperm.xlu0 %78, %v65
  %v80 = vpop.permute.xlu0 %79
  %83 = vset.pattern.permute.xlu0 0
  %84 = vperm.xlu0 %83, %v66
  %v85 = vpop.permute.xlu0 %84
  %vm87 = vcmask 220160
  %v89 = vsel %vm87, %v23, 0
  %v92 = vsel %vm87, %v24, 0
  %v95 = vsel %vm87, %v25, 0
  %v98 = vsel %vm87, %v26, 0
  %vm100 = vcmask 1042432
  %v102 = vsel %vm100, %v54, 0
  %v105 = vsel %vm100, %v55, 0
  %v108 = vsel %vm100, %v56, 0
  %v111 = vsel %vm100, %v57, 0
  %v114 = vsel %vm100, %v58, 0
  %v117 = vsel %vm100, %v59, 0
  %v120 = vsel %vm100, %v60, 0
  %v123 = vsel %vm100, %v61, 0
  %v126 = vsel %vm100, %v62, 0
  %128 = vmatprep.subr.mxu0 %v28
  %129 = vmatpush1.msra.mxu0 %v27
  %130 = vmatprep.subr.mxu0 %v37
  %131 = vmatpush1.msra.mxu0 %v36
  %132 = vmatprep.subr.mxu0 %v46
  %133 = vmatpush1.msra.mxu0 %v45
  %134 = vmatprep.subr.mxu0 %v105
  %135 = vmatpush1.msra.mxu0 %v102
  %136 = vmatprep.subr.mxu0 0.0
  %137 = vmatpush1.msra.mxu0 0.0
  %138 = vmatprep.subr.mxu0 0.0
  %139 = vmatpush1.msra.mxu0 0.0
  %140 = vmatprep.subr.mxu0 0.0
  %141 = vmatpush1.msra.mxu0 0.0
  %142 = vmatprep.subr.mxu0 0.0
  %143 = vmatpush1.msra.mxu0 0.0
  %144 = vmatprep.subr.mxu0 0.0
  %145 = vmatpush1.msra.mxu0 0.0
  %146 = vmatprep.subr.mxu0 0.0
  %147 = vmatpush1.msra.mxu0 0.0
  %148 = vmatprep.subr.mxu0 0.0
  %149 = vmatpush1.msra.mxu0 0.0
  %150 = vmatprep.subr.mxu0 0.0
  %151 = vmatpush1.msra.mxu0 0.0
  %152 = vmatprep.subr.mxu0 0.0
  %153 = vmatpush1.msra.mxu0 0.0
  %154 = vmatprep.subr.mxu0 0.0
  %155 = vmatpush1.msra.mxu0 0.0
  %156 = vmatprep.subr.mxu0 0.0
  %157 = vmatpush1.msra.mxu0 0.0
  %158 = vmatprep.subr.mxu0 0.0
  %159 = vmatpush1.msra.mxu0 0.0
  %160 = vmatprep.subr.mxu0 0.0
  %161 = vmatpush1.msra.mxu0 0.0
  %162 = vmatprep.subr.mxu0 0.0
  %163 = vmatpush1.msra.mxu0 0.0
  %164 = vmatprep.subr.mxu0 0.0
  %165 = vmatpush1.msra.mxu0 0.0
  %166 = vmatprep.subr.mxu0 0.0
  %167 = vmatpush1.msra.mxu0 0.0
  %168 = vmatprep.subr.mxu0 0.0
  %169 = vmatpush1.msra.mxu0 0.0
  %170 = vmatprep.subr.mxu0 0.0
  %171 = vmatpush1.msra.mxu0 0.0
  %172 = vmatprep.subr.mxu0 0.0
  %173 = vmatpush1.msra.mxu0 0.0
  %174 = vmatprep.subr.mxu0 0.0
  %175 = vmatpush1.msra.mxu0 0.0
  %176 = vmatprep.subr.mxu0 0.0
  %177 = vmatpush1.msra.mxu0 0.0
  %178 = vmatprep.subr.mxu0 0.0
  %179 = vmatpush1.msra.mxu0 0.0
  %180 = vmatprep.subr.mxu0 0.0
  %181 = vmatpush1.msra.mxu0 0.0
  %182 = vmatprep.subr.mxu0 0.0
  %183 = vmatpush1.msra.mxu0 0.0
  %184 = vmatprep.subr.mxu0 0.0
  %185 = vmatpush1.msra.mxu0 0.0
  %186 = vmatprep.subr.mxu0 0.0
  %187 = vmatpush1.msra.mxu0 0.0
  %188 = vmatprep.subr.mxu0 0.0
  %189 = vmatpush1.msra.mxu0 0.0
  %190 = vmatprep.subr.mxu0 0.0
  %191 = vmatpush1.msra.mxu0 0.0
  %192 = vmatprep.mubr.f32.mxu0 0.0
  %193 = vmatmul.mubr.f32.gmra.mrb[0].mxu0 %v89
  %v194 = vpop.f32.mrb[0].mxu0
  %v195 = vadd.f32 %v70, %v194
  %v196 = vpop.f32.mrb[0].mxu0
  %v197 = vadd.f32 %v70, %v196
  %198 = vmatprep.mubr.f32.mxu0 0.0
  %199 = vmatmul.mubr.f32.gmra.mrb[0].mxu0 %v92
  %v200 = vpop.f32.mrb[0].mxu0
  %v201 = vadd.f32 %v75, %v200
  %v202 = vpop.f32.mrb[0].mxu0
  %v203 = vadd.f32 %v75, %v202
  %204 = vmatprep.mubr.f32.mxu0 0.0
  %205 = vmatmul.mubr.f32.gmra.mrb[0].mxu0 %v95
  %v206 = vpop.f32.mrb[0].mxu0
  %v207 = vadd.f32 %v80, %v206
  %v208 = vpop.f32.mrb[0].mxu0
  %v209 = vadd.f32 %v80, %v208
  %210 = vmatprep.mubr.f32.mxu0 0.0
  %211 = vmatmul.mubr.f32.gmra.mrb[0].mxu0 %v98
  %v212 = vpop.f32.mrb[0].mxu0
  %v213 = vadd.f32 %v85, %v212
  %v214 = vpop.f32.mrb[0].mxu0
  %v215 = vadd.f32 %v85, %v214
  %216 = vdwg.mxu0
  %217 = vmatprep.subr.mxu0 %v30
  %218 = vmatpush1.msra.mxu0 %v29
  %219 = vmatprep.subr.mxu0 %v39
  %220 = vmatpush1.msra.mxu0 %v38
  %221 = vmatprep.subr.mxu0 %v48
  %222 = vmatpush1.msra.mxu0 %v47
  %223 = vmatprep.subr.mxu0 %v111
  %224 = vmatpush1.msra.mxu0 %v108
  %225 = vmatprep.subr.mxu0 0.0
  %226 = vmatpush1.msra.mxu0 0.0
  %227 = vmatprep.subr.mxu0 0.0
  %228 = vmatpush1.msra.mxu0 0.0
  %229 = vmatprep.subr.mxu0 0.0
  %230 = vmatpush1.msra.mxu0 0.0
  %231 = vmatprep.subr.mxu0 0.0
  %232 = vmatpush1.msra.mxu0 0.0
  %233 = vmatprep.subr.mxu0 0.0
  %234 = vmatpush1.msra.mxu0 0.0
  %235 = vmatprep.subr.mxu0 0.0
  %236 = vmatpush1.msra.mxu0 0.0
  %237 = vmatprep.subr.mxu0 0.0
  %238 = vmatpush1.msra.mxu0 0.0
  %239 = vmatprep.subr.mxu0 0.0
  %240 = vmatpush1.msra.mxu0 0.0
  %241 = vmatprep.subr.mxu0 0.0
  %242 = vmatpush1.msra.mxu0 0.0
  %243 = vmatprep.subr.mxu0 0.0
  %244 = vmatpush1.msra.mxu0 0.0
  %245 = vmatprep.subr.mxu0 0.0
  %246 = vmatpush1.msra.mxu0 0.0
  %247 = vmatprep.subr.mxu0 0.0
  %248 = vmatpush1.msra.mxu0 0.0
  %249 = vmatprep.subr.mxu0 0.0
  %250 = vmatpush1.msra.mxu0 0.0
  %251 = vmatprep.subr.mxu0 0.0
  %252 = vmatpush1.msra.mxu0 0.0
  %253 = vmatprep.subr.mxu0 0.0
  %254 = vmatpush1.msra.mxu0 0.0
  %255 = vmatprep.subr.mxu0 0.0
  %256 = vmatpush1.msra.mxu0 0.0
  %257 = vmatprep.subr.mxu0 0.0
  %258 = vmatpush1.msra.mxu0 0.0
  %259 = vmatprep.subr.mxu0 0.0
  %260 = vmatpush1.msra.mxu0 0.0
  %261 = vmatprep.subr.mxu0 0.0
  %262 = vmatpush1.msra.mxu0 0.0
  %263 = vmatprep.subr.mxu0 0.0
  %264 = vmatpush1.msra.mxu0 0.0
  %265 = vmatprep.subr.mxu0 0.0
  %266 = vmatpush1.msra.mxu0 0.0
  %267 = vmatprep.subr.mxu0 0.0
  %268 = vmatpush1.msra.mxu0 0.0
  %269 = vmatprep.subr.mxu0 0.0
  %270 = vmatpush1.msra.mxu0 0.0
  %271 = vmatprep.subr.mxu0 0.0
  %272 = vmatpush1.msra.mxu0 0.0
  %273 = vmatprep.subr.mxu0 0.0
  %274 = vmatpush1.msra.mxu0 0.0
  %275 = vmatprep.subr.mxu0 0.0
  %276 = vmatpush1.msra.mxu0 0.0
  %277 = vmatprep.subr.mxu0 0.0
  %278 = vmatpush1.msra.mxu0 0.0
  %279 = vmatprep.subr.mxu0 0.0
  %280 = vmatpush1.msra.mxu0 0.0
  %281 = vmatprep.mubr.f32.mxu0 0.0
  %282 = vmatmul.mubr.f32.gmra.mrb[0].mxu0 %v89
  %v283 = vpop.f32.mrb[0].mxu0
  %v284 = vadd.f32 %v70, %v283
  %v285 = vpop.f32.mrb[0].mxu0
  %v286 = vadd.f32 %v70, %v285
  %287 = vmatprep.mubr.f32.mxu0 0.0
  %288 = vmatmul.mubr.f32.gmra.mrb[0].mxu0 %v92
  %v289 = vpop.f32.mrb[0].mxu0
  %v290 = vadd.f32 %v75, %v289
  %v291 = vpop.f32.mrb[0].mxu0
  %v292 = vadd.f32 %v75, %v291
  %293 = vmatprep.mubr.f32.mxu0 0.0
  %294 = vmatmul.mubr.f32.gmra.mrb[0].mxu0 %v95
  %v295 = vpop.f32.mrb[0].mxu0
  %v296 = vadd.f32 %v80, %v295
  %v297 = vpop.f32.mrb[0].mxu0
  %v298 = vadd.f32 %v80, %v297
  %299 = vmatprep.mubr.f32.mxu0 0.0
  %300 = vmatmul.mubr.f32.gmra.mrb[0].mxu0 %v98
  %v301 = vpop.f32.mrb[0].mxu0
  %v302 = vadd.f32 %v85, %v301
  %v303 = vpop.f32.mrb[0].mxu0
  %v304 = vadd.f32 %v85, %v303
  %305 = vdwg.mxu0
  %306 = vmatprep.subr.mxu0 %v32
  %307 = vmatpush1.msra.mxu0 %v31
  %308 = vmatprep.subr.mxu0 %v41
  %309 = vmatpush1.msra.mxu0 %v40
  %310 = vmatprep.subr.mxu0 %v50
  %311 = vmatpush1.msra.mxu0 %v49
  %312 = vmatprep.subr.mxu0 %v117
  %313 = vmatpush1.msra.mxu0 %v114
  %314 = vmatprep.subr.mxu0 0.0
  %315 = vmatpush1.msra.mxu0 0.0
  %316 = vmatprep.subr.mxu0 0.0
  %317 = vmatpush1.msra.mxu0 0.0
  %318 = vmatprep.subr.mxu0 0.0
  %319 = vmatpush1.msra.mxu0 0.0
  %320 = vmatprep.subr.mxu0 0.0
  %321 = vmatpush1.msra.mxu0 0.0
  %322 = vmatprep.subr.mxu0 0.0
  %323 = vmatpush1.msra.mxu0 0.0
  %324 = vmatprep.subr.mxu0 0.0
  %325 = vmatpush1.msra.mxu0 0.0
  %326 = vmatprep.subr.mxu0 0.0
  %327 = vmatpush1.msra.mxu0 0.0
  %328 = vmatprep.subr.mxu0 0.0
  %329 = vmatpush1.msra.mxu0 0.0
  %330 = vmatprep.subr.mxu0 0.0
  %331 = vmatpush1.msra.mxu0 0.0
  %332 = vmatprep.subr.mxu0 0.0
  %333 = vmatpush1.msra.mxu0 0.0
  %334 = vmatprep.subr.mxu0 0.0
  %335 = vmatpush1.msra.mxu0 0.0
  %336 = vmatprep.subr.mxu0 0.0
  %337 = vmatpush1.msra.mxu0 0.0
  %338 = vmatprep.subr.mxu0 0.0
  %339 = vmatpush1.msra.mxu0 0.0
  %340 = vmatprep.subr.mxu0 0.0
  %341 = vmatpush1.msra.mxu0 0.0
  %342 = vmatprep.subr.mxu0 0.0
  %343 = vmatpush1.msra.mxu0 0.0
  %344 = vmatprep.subr.mxu0 0.0
  %345 = vmatpush1.msra.mxu0 0.0
  %346 = vmatprep.subr.mxu0 0.0
  %347 = vmatpush1.msra.mxu0 0.0
  %348 = vmatprep.subr.mxu0 0.0
  %349 = vmatpush1.msra.mxu0 0.0
  %350 = vmatprep.subr.mxu0 0.0
  %351 = vmatpush1.msra.mxu0 0.0
  %352 = vmatprep.subr.mxu0 0.0
  %353 = vmatpush1.msra.mxu0 0.0
  %354 = vmatprep.subr.mxu0 0.0
  %355 = vmatpush1.msra.mxu0 0.0
  %356 = vmatprep.subr.mxu0 0.0
  %357 = vmatpush1.msra.mxu0 0.0
  %358 = vmatprep.subr.mxu0 0.0
  %359 = vmatpush1.msra.mxu0 0.0
  %360 = vmatprep.subr.mxu0 0.0
  %361 = vmatpush1.msra.mxu0 0.0
  %362 = vmatprep.subr.mxu0 0.0
  %363 = vmatpush1.msra.mxu0 0.0
  %364 = vmatprep.subr.mxu0 0.0
  %365 = vmatpush1.msra.mxu0 0.0
  %366 = vmatprep.subr.mxu0 0.0
  %367 = vmatpush1.msra.mxu0 0.0
  %368 = vmatprep.subr.mxu0 0.0
  %369 = vmatpush1.msra.mxu0 0.0
  %370 = vmatprep.mubr.f32.mxu0 0.0
  %371 = vmatmul.mubr.f32.gmra.mrb[0].mxu0 %v89
  %v372 = vpop.f32.mrb[0].mxu0
  %v373 = vadd.f32 %v70, %v372
  %v374 = vpop.f32.mrb[0].mxu0
  %v375 = vadd.f32 %v70, %v374
  %376 = vmatprep.mubr.f32.mxu0 0.0
  %377 = vmatmul.mubr.f32.gmra.mrb[0].mxu0 %v92
  %v378 = vpop.f32.mrb[0].mxu0
  %v379 = vadd.f32 %v75, %v378
  %v380 = vpop.f32.mrb[0].mxu0
  %v381 = vadd.f32 %v75, %v380
  %382 = vmatprep.mubr.f32.mxu0 0.0
  %383 = vmatmul.mubr.f32.gmra.mrb[0].mxu0 %v95
  %v384 = vpop.f32.mrb[0].mxu0
  %v385 = vadd.f32 %v80, %v384
  %v386 = vpop.f32.mrb[0].mxu0
  %v387 = vadd.f32 %v80, %v386
  %388 = vmatprep.mubr.f32.mxu0 0.0
  %389 = vmatmul.mubr.f32.gmra.mrb[0].mxu0 %v98
  %v390 = vpop.f32.mrb[0].mxu0
  %v391 = vadd.f32 %v85, %v390
  %v392 = vpop.f32.mrb[0].mxu0
  %v393 = vadd.f32 %v85, %v392
  %394 = vdwg.mxu0
  %395 = vmatprep.subr.mxu0 %v34
  %396 = vmatpush1.msra.mxu0 %v33
  %397 = vmatprep.subr.mxu0 %v43
  %398 = vmatpush1.msra.mxu0 %v42
  %399 = vmatprep.subr.mxu0 %v52
  %400 = vmatpush1.msra.mxu0 %v51
  %401 = vmatprep.subr.mxu0 %v123
  %402 = vmatpush1.msra.mxu0 %v120
  %403 = vmatprep.subr.mxu0 0.0
  %404 = vmatpush1.msra.mxu0 0.0
  %405 = vmatprep.subr.mxu0 0.0
  %406 = vmatpush1.msra.mxu0 0.0
  %407 = vmatprep.subr.mxu0 0.0
  %408 = vmatpush1.msra.mxu0 0.0
  %409 = vmatprep.subr.mxu0 0.0
  %410 = vmatpush1.msra.mxu0 0.0
  %411 = vmatprep.subr.mxu0 0.0
  %412 = vmatpush1.msra.mxu0 0.0
  %413 = vmatprep.subr.mxu0 0.0
  %414 = vmatpush1.msra.mxu0 0.0
  %415 = vmatprep.subr.mxu0 0.0
  %416 = vmatpush1.msra.mxu0 0.0
  %417 = vmatprep.subr.mxu0 0.0
  %418 = vmatpush1.msra.mxu0 0.0
  %419 = vmatprep.subr.mxu0 0.0
  %420 = vmatpush1.msra.mxu0 0.0
  %421 = vmatprep.subr.mxu0 0.0
  %422 = vmatpush1.msra.mxu0 0.0
  %423 = vmatprep.subr.mxu0 0.0
  %424 = vmatpush1.msra.mxu0 0.0
  %425 = vmatprep.subr.mxu0 0.0
  %426 = vmatpush1.msra.mxu0 0.0
  %427 = vmatprep.subr.mxu0 0.0
  %428 = vmatpush1.msra.mxu0 0.0
  %429 = vmatprep.subr.mxu0 0.0
  %430 = vmatpush1.msra.mxu0 0.0
  %431 = vmatprep.subr.mxu0 0.0
  %432 = vmatpush1.msra.mxu0 0.0
  %433 = vmatprep.subr.mxu0 0.0
  %434 = vmatpush1.msra.mxu0 0.0
  %435 = vmatprep.subr.mxu0 0.0
  %436 = vmatpush1.msra.mxu0 0.0
  %437 = vmatprep.subr.mxu0 0.0
  %438 = vmatpush1.msra.mxu0 0.0
  %439 = vmatprep.subr.mxu0 0.0
  %440 = vmatpush1.msra.mxu0 0.0
  %441 = vmatprep.subr.mxu0 0.0
  %442 = vmatpush1.msra.mxu0 0.0
  %443 = vmatprep.subr.mxu0 0.0
  %444 = vmatpush1.msra.mxu0 0.0
  %445 = vmatprep.subr.mxu0 0.0
  %446 = vmatpush1.msra.mxu0 0.0
  %447 = vmatprep.subr.mxu0 0.0
  %448 = vmatpush1.msra.mxu0 0.0
  %449 = vmatprep.subr.mxu0 0.0
  %450 = vmatpush1.msra.mxu0 0.0
  %451 = vmatprep.subr.mxu0 0.0
  %452 = vmatpush1.msra.mxu0 0.0
  %453 = vmatprep.subr.mxu0 0.0
  %454 = vmatpush1.msra.mxu0 0.0
  %455 = vmatprep.subr.mxu0 0.0
  %456 = vmatpush1.msra.mxu0 0.0
  %457 = vmatprep.subr.mxu0 0.0
  %458 = vmatpush1.msra.mxu0 0.0
  %459 = vmatprep.mubr.f32.mxu0 0.0
  %460 = vmatmul.mubr.f32.gmra.mrb[0].mxu0 %v89
  %v461 = vpop.f32.mrb[0].mxu0
  %v462 = vadd.f32 %v70, %v461
  %v463 = vpop.f32.mrb[0].mxu0
  %v464 = vadd.f32 %v70, %v463
  %465 = vmatprep.mubr.f32.mxu0 0.0
  %466 = vmatmul.mubr.f32.gmra.mrb[0].mxu0 %v92
  %v467 = vpop.f32.mrb[0].mxu0
  %v468 = vadd.f32 %v75, %v467
  %v469 = vpop.f32.mrb[0].mxu0
  %v470 = vadd.f32 %v75, %v469
  %471 = vmatprep.mubr.f32.mxu0 0.0
  %472 = vmatmul.mubr.f32.gmra.mrb[0].mxu0 %v95
  %v473 = vpop.f32.mrb[0].mxu0
  %v474 = vadd.f32 %v80, %v473
  %v475 = vpop.f32.mrb[0].mxu0
  %v476 = vadd.f32 %v80, %v475
  %477 = vmatprep.mubr.f32.mxu0 0.0
  %478 = vmatmul.mubr.f32.gmra.mrb[0].mxu0 %v98
  %v479 = vpop.f32.mrb[0].mxu0
  %v480 = vadd.f32 %v85, %v479
  %v481 = vpop.f32.mrb[0].mxu0
  %v482 = vadd.f32 %v85, %v481
  %483 = vdwg.mxu0
  %484 = vmatprep.subr.mxu0 0.0
  %485 = vmatpush1.msra.mxu0 %v35
  %486 = vmatprep.subr.mxu0 0.0
  %487 = vmatpush1.msra.mxu0 %v44
  %488 = vmatprep.subr.mxu0 0.0
  %489 = vmatpush1.msra.mxu0 %v53
  %490 = vmatprep.subr.mxu0 0.0
  %491 = vmatpush1.msra.mxu0 %v126
  %492 = vmatprep.subr.mxu0 0.0
  %493 = vmatpush1.msra.mxu0 0.0
  %494 = vmatprep.subr.mxu0 0.0
  %495 = vmatpush1.msra.mxu0 0.0
  %496 = vmatprep.subr.mxu0 0.0
  %497 = vmatpush1.msra.mxu0 0.0
  %498 = vmatprep.subr.mxu0 0.0
  %499 = vmatpush1.msra.mxu0 0.0
  %500 = vmatprep.subr.mxu0 0.0
  %501 = vmatpush1.msra.mxu0 0.0
  %502 = vmatprep.subr.mxu0 0.0
  %503 = vmatpush1.msra.mxu0 0.0
  %504 = vmatprep.subr.mxu0 0.0
  %505 = vmatpush1.msra.mxu0 0.0
  %506 = vmatprep.subr.mxu0 0.0
  %507 = vmatpush1.msra.mxu0 0.0
  %508 = vmatprep.subr.mxu0 0.0
  %509 = vmatpush1.msra.mxu0 0.0
  %510 = vmatprep.subr.mxu0 0.0
  %511 = vmatpush1.msra.mxu0 0.0
  %512 = vmatprep.subr.mxu0 0.0
  %513 = vmatpush1.msra.mxu0 0.0
  %514 = vmatprep.subr.mxu0 0.0
  %515 = vmatpush1.msra.mxu0 0.0
  %516 = vmatprep.subr.mxu0 0.0
  %517 = vmatpush1.msra.mxu0 0.0
  %518 = vmatprep.subr.mxu0 0.0
  %519 = vmatpush1.msra.mxu0 0.0
  %520 = vmatprep.subr.mxu0 0.0
  %521 = vmatpush1.msra.mxu0 0.0
  %522 = vmatprep.subr.mxu0 0.0
  %523 = vmatpush1.msra.mxu0 0.0
  %524 = vmatprep.subr.mxu0 0.0
  %525 = vmatpush1.msra.mxu0 0.0
  %526 = vmatprep.subr.mxu0 0.0
  %527 = vmatpush1.msra.mxu0 0.0
  %528 = vmatprep.subr.mxu0 0.0
  %529 = vmatpush1.msra.mxu0 0.0
  %530 = vmatprep.subr.mxu0 0.0
  %531 = vmatpush1.msra.mxu0 0.0
  %532 = vmatprep.subr.mxu0 0.0
  %533 = vmatpush1.msra.mxu0 0.0
  %534 = vmatprep.subr.mxu0 0.0
  %535 = vmatpush1.msra.mxu0 0.0
  %536 = vmatprep.subr.mxu0 0.0
  %537 = vmatpush1.msra.mxu0 0.0
  %538 = vmatprep.subr.mxu0 0.0
  %539 = vmatpush1.msra.mxu0 0.0
  %540 = vmatprep.subr.mxu0 0.0
  %541 = vmatpush1.msra.mxu0 0.0
  %542 = vmatprep.subr.mxu0 0.0
  %543 = vmatpush1.msra.mxu0 0.0
  %544 = vmatprep.subr.mxu0 0.0
  %545 = vmatpush1.msra.mxu0 0.0
  %546 = vmatprep.subr.mxu0 0.0
  %547 = vmatpush1.msra.mxu0 0.0
  %548 = vmatprep.mubr.f32.mxu0 0.0
  %549 = vmatmul.mubr.f32.gmra.mrb[0].mxu0 %v89
  %v550 = vpop.f32.mrb[0].mxu0
  %v551 = vadd.f32 %v70, %v550
  %v552 = vpop.f32.mrb[0].mxu0
  %553 = vmatprep.mubr.f32.mxu0 0.0
  %554 = vmatmul.mubr.f32.gmra.mrb[0].mxu0 %v92
  %v555 = vpop.f32.mrb[0].mxu0
  %v556 = vadd.f32 %v75, %v555
  %v557 = vpop.f32.mrb[0].mxu0
  %558 = vmatprep.mubr.f32.mxu0 0.0
  %559 = vmatmul.mubr.f32.gmra.mrb[0].mxu0 %v95
  %v560 = vpop.f32.mrb[0].mxu0
  %v561 = vadd.f32 %v80, %v560
  %v562 = vpop.f32.mrb[0].mxu0
  %563 = vmatprep.mubr.f32.mxu0 0.0
  %564 = vmatmul.mubr.f32.gmra.mrb[0].mxu0 %v98
  %v565 = vpop.f32.mrb[0].mxu0
  %v566 = vadd.f32 %v85, %v565
  %v567 = vpop.f32.mrb[0].mxu0
  %568 = vdwg.mxu0
  %v569 = vmax.f32 %v195, 0.0
  %v570 = vmax.f32 %v197, 0.0
  %v571 = vmax.f32 %v284, 0.0
  %v572 = vmax.f32 %v286, 0.0
  %v573 = vmax.f32 %v373, 0.0
  %v574 = vmax.f32 %v375, 0.0
  %v575 = vmax.f32 %v462, 0.0
  %v576 = vmax.f32 %v464, 0.0
  %v577 = vmax.f32 %v551, 0.0
  %v578 = vmax.f32 %v201, 0.0
  %v579 = vmax.f32 %v203, 0.0
  %v580 = vmax.f32 %v290, 0.0
  %v581 = vmax.f32 %v292, 0.0
  %v582 = vmax.f32 %v379, 0.0
  %v583 = vmax.f32 %v381, 0.0
  %v584 = vmax.f32 %v468, 0.0
  %v585 = vmax.f32 %v470, 0.0
  %v586 = vmax.f32 %v556, 0.0
  %v587 = vmax.f32 %v207, 0.0
  %v588 = vmax.f32 %v209, 0.0
  %v589 = vmax.f32 %v296, 0.0
  %v590 = vmax.f32 %v298, 0.0
  %v591 = vmax.f32 %v385, 0.0
  %v592 = vmax.f32 %v387, 0.0
  %v593 = vmax.f32 %v474, 0.0
  %v594 = vmax.f32 %v476, 0.0
  %v595 = vmax.f32 %v561, 0.0
  %v596 = vmax.f32 %v213, 0.0
  %v597 = vmax.f32 %v215, 0.0
  %v598 = vmax.f32 %v302, 0.0
  %v599 = vmax.f32 %v304, 0.0
  %v600 = vmax.f32 %v391, 0.0
  %v601 = vmax.f32 %v393, 0.0
  %v602 = vmax.f32 %v480, 0.0
  %v603 = vmax.f32 %v482, 0.0
  %v604 = vmax.f32 %v566, 0.0
  %v605 = vld [vmem:[%s3] sm:$0xff]
  %v606 = vld [vmem:[%s3 + $0x8] sm:$0xff]
  %v607 = vld [vmem:[%s3 + $0x10] sm:$0xff]
  %v608 = vld [vmem:[%s3 + $0x18] sm:$0xff]
  %v609 = vld [vmem:[%s3 + $0x20] sm:$0xff]
  %v610 = vld [vmem:[%s3 + $0x28] sm:$0xff]
  %v611 = vld [vmem:[%s3 + $0x30] sm:$0xff]
  %v612 = vld [vmem:[%s3 + $0x38] sm:$0xff]
  %v613 = vld [vmem:[%s3 + $0x40] sm:$0xff]
  %v614 = vld [vmem:[%s3 + $0x48] sm:$0xff]
  %v615 = vld [vmem:[%s3 + $0x50] sm:$0xff]
  %v616 = vld [vmem:[%s3 + $0x58] sm:$0xff]
  %v617 = vld [vmem:[%s3 + $0x60] sm:$0xff]
  %v618 = vld [vmem:[%s3 + $0x68] sm:$0xff]
  %v619 = vld [vmem:[%s3 + $0x70] sm:$0xff]
  %v620 = vld [vmem:[%s3 + $0x78] sm:$0xff]
  %v621 = vld [vmem:[%s3 + $0x80] sm:$0xff]
  %v622 = vld [vmem:[%s3 + $0x88] sm:$0xff]
  %v623 = vld [vmem:[%s3 + $0x90] sm:$0xff]
  %v624 = vld [vmem:[%s3 + $0x98] sm:$0xff]
  %v625 = vld [vmem:[%s3 + $0xa0] sm:$0xff]
  %v626 = vld [vmem:[%s3 + $0xa8] sm:$0xff]
  %v627 = vld [vmem:[%s3 + $0xb0] sm:$0xff]
  %v628 = vld [vmem:[%s3 + $0xb8] sm:$0xff]
  %v629 = vld [vmem:[%s3 + $0xc0] sm:$0xff]
  %v630 = vld [vmem:[%s3 + $0xc8] sm:$0xff]
  %v631 = vld [vmem:[%s3 + $0xd0] sm:$0xff]
  %v632 = vld [vmem:[%s3 + $0xd8] sm:$0xff]
  %v633 = vld [vmem:[%s3 + $0xe0] sm:$0xff]
  %v634 = vld [vmem:[%s3 + $0xe8] sm:$0xff]
  %v635 = vld [vmem:[%s3 + $0xf0] sm:$0xff]
  %v636 = vld [vmem:[%s3 + $0xf8] sm:$0xff]
  %v637 = vld [vmem:[%s3 + $0x100] sm:$0xff]
  %v638 = vld [vmem:[%s3 + $0x108] sm:$0xff]
  %v639 = vld [vmem:[%s3 + $0x110] sm:$0xff]
  %v640 = vld [vmem:[%s3 + $0x118] sm:$0xff]
  %v641 = vld [vmem:[%s3 + $0x120] sm:$0xff]
  %v642 = vld [vmem:[%s3 + $0x128] sm:$0xff]
  %v643 = vld [vmem:[%s3 + $0x130] sm:$0xff]
  %v644 = vld [vmem:[%s3 + $0x138] sm:$0xff]
  %v645 = vld [vmem:[%s3 + $0x140] sm:$0xff]
  %v646 = vld [vmem:[%s3 + $0x148] sm:$0xff]
  %v647 = vld [vmem:[%s3 + $0x150] sm:$0xff]
  %v648 = vld [vmem:[%s3 + $0x158] sm:$0xff]
  %v649 = vld [vmem:[%s3 + $0x160] sm:$0xff]
  %v650 = vld [vmem:[%s3 + $0x168] sm:$0xff]
  %v651 = vld [vmem:[%s3 + $0x170] sm:$0xff]
  %v652 = vld [vmem:[%s3 + $0x178] sm:$0xff]
  %v653 = vld [vmem:[%s3 + $0x180] sm:$0xff]
  %v654 = vld [vmem:[%s3 + $0x188] sm:$0xff]
  %v655 = vld [vmem:[%s3 + $0x190] sm:$0xff]
  %v656 = vld [vmem:[%s3 + $0x198] sm:$0xff]
  %v657 = vld [vmem:[%s3 + $0x1a0] sm:$0xff]
  %v658 = vld [vmem:[%s3 + $0x1a8] sm:$0xff]
  %v659 = vld [vmem:[%s3 + $0x1b0] sm:$0xff]
  %v660 = vld [vmem:[%s3 + $0x1b8] sm:$0xff]
  %v661 = vld [vmem:[%s3 + $0x1c0] sm:$0xff]
  %v662 = vld [vmem:[%s3 + $0x1c8] sm:$0xff]
  %v663 = vld [vmem:[%s3 + $0x1d0] sm:$0xff]
  %v664 = vld [vmem:[%s3 + $0x1d8] sm:$0xff]
  %v665 = vld [vmem:[%s3 + $0x1e0] sm:$0xff]
  %v666 = vld [vmem:[%s3 + $0x1e8] sm:$0xff]
  %v667 = vld [vmem:[%s3 + $0x1f0] sm:$0xff]
  %v668 = vld [vmem:[%s3 + $0x1f8] sm:$0xff]
  %v669 = vld [vmem:[%s3 + $0x200] sm:$0xff]
  %v670 = vld [vmem:[%s3 + $0x208] sm:$0xff]
  %v671 = vld [vmem:[%s3 + $0x210] sm:$0xff]
  %v672 = vld [vmem:[%s3 + $0x218] sm:$0xff]
  %v673 = vld [vmem:[%s3 + $0x220] sm:$0xff]
  %v674 = vld [vmem:[%s3 + $0x228] sm:$0xff]
  %v675 = vld [vmem:[%s3 + $0x230] sm:$0xff]
  %v676 = vld [vmem:[%s3 + $0x238] sm:$0xff]
  %v677 = vld [vmem:[%s3 + $0x240] sm:$0xff]
  %v678 = vld [vmem:[%s3 + $0x248] sm:$0xff]
  %v679 = vld [vmem:[%s3 + $0x250] sm:$0xff]
  %v680 = vld [vmem:[%s3 + $0x258] sm:$0xff]
  %v681 = vld [vmem:[%s3 + $0x260] sm:$0xff]
  %v682 = vld [vmem:[%s3 + $0x268] sm:$0xff]
  %v683 = vld [vmem:[%s3 + $0x270] sm:$0xff]
  %v684 = vld [vmem:[%s3 + $0x278] sm:$0xff]
  %v685 = vld [vmem:[%s3 + $0x280] sm:$0xff]
  %v686 = vld [vmem:[%s3 + $0x288] sm:$0xff]
  %v687 = vld [vmem:[%s3 + $0x290] sm:$0xff]
  %v688 = vld [vmem:[%s3 + $0x298] sm:$0xff]
  %v689 = vld [vmem:[%s3 + $0x2a0] sm:$0xff]
  %v690 = vld [vmem:[%s3 + $0x2a8] sm:$0xff]
  %v691 = vld [vmem:[%s3 + $0x2b0] sm:$0xff]
  %v692 = vld [vmem:[%s3 + $0x2b8] sm:$0xff]
  %v693 = vld [vmem:[%s3 + $0x2c0] sm:$0xff]
  %v694 = vld [vmem:[%s3 + $0x2c8] sm:$0xff]
  %v695 = vld [vmem:[%s3 + $0x2d0] sm:$0xff]
  %v696 = vld [vmem:[%s3 + $0x2d8] sm:$0xff]
  %v697 = vld [vmem:[%s3 + $0x2e0] sm:$0xff]
  %v698 = vld [vmem:[%s3 + $0x2e8] sm:$0xff]
  %v699 = vld [vmem:[%s3 + $0x2f0] sm:$0xff]
  %v700 = vld [vmem:[%s3 + $0x2f8] sm:$0xff]
  %v701 = vld [vmem:[%s3 + $0x300] sm:$0xff]
  %v702 = vld [vmem:[%s3 + $0x308] sm:$0xff]
  %v703 = vld [vmem:[%s3 + $0x310] sm:$0xff]
  %v704 = vld [vmem:[%s3 + $0x318] sm:$0xff]
  %v705 = vld [vmem:[%s3 + $0x320] sm:$0xff]
  %v706 = vld [vmem:[%s3 + $0x328] sm:$0xff]
  %v707 = vld [vmem:[%s3 + $0x330] sm:$0xff]
  %v708 = vld [vmem:[%s3 + $0x338] sm:$0xff]
  %v709 = vld [vmem:[%s3 + $0x340] sm:$0xff]
  %v710 = vld [vmem:[%s3 + $0x348] sm:$0xff]
  %v711 = vld [vmem:[%s3 + $0x350] sm:$0xff]
  %v712 = vld [vmem:[%s3 + $0x358] sm:$0xff]
  %v713 = vld [vmem:[%s3 + $0x360] sm:$0xff]
  %v714 = vld [vmem:[%s3 + $0x368] sm:$0xff]
  %v715 = vld [vmem:[%s3 + $0x370] sm:$0xff]
  %v716 = vld [vmem:[%s3 + $0x378] sm:$0xff]
  %v717 = vld [vmem:[%s3 + $0x380] sm:$0xff]
  %v718 = vld [vmem:[%s3 + $0x388] sm:$0xff]
  %v719 = vld [vmem:[%s3 + $0x390] sm:$0xff]
  %v720 = vld [vmem:[%s3 + $0x398] sm:$0xff]
  %v721 = vld [vmem:[%s3 + $0x3a0] sm:$0xff]
  %v722 = vld [vmem:[%s3 + $0x3a8] sm:$0xff]
  %v723 = vld [vmem:[%s3 + $0x3b0] sm:$0xff]
  %v724 = vld [vmem:[%s3 + $0x3b8] sm:$0xff]
  %v725 = vld [vmem:[%s3 + $0x3c0] sm:$0xff]
  %v726 = vld [vmem:[%s3 + $0x3c8] sm:$0xff]
  %v727 = vld [vmem:[%s3 + $0x3d0] sm:$0xff]
  %v728 = vld [vmem:[%s3 + $0x3d8] sm:$0xff]
  %v729 = vld [vmem:[%s3 + $0x3e0] sm:$0xff]
  %v730 = vld [vmem:[%s3 + $0x3e8] sm:$0xff]
  %v731 = vld [vmem:[%s3 + $0x3f0] sm:$0xff]
  %v732 = vld [vmem:[%s3 + $0x3f8] sm:$0xff]
  %v733 = vld [vmem:[%s3 + $0x400] sm:$0xff]
  %v734 = vld [vmem:[%s3 + $0x408] sm:$0xff]
  %v735 = vld [vmem:[%s3 + $0x410] sm:$0xff]
  %v736 = vld [vmem:[%s3 + $0x418] sm:$0xff]
  %v737 = vld [vmem:[%s3 + $0x420] sm:$0xff]
  %v738 = vld [vmem:[%s3 + $0x428] sm:$0xff]
  %v739 = vld [vmem:[%s3 + $0x430] sm:$0xff]
  %v740 = vld [vmem:[%s3 + $0x438] sm:$0xff]
  %v741 = vld [vmem:[%s3 + $0x440] sm:$0xff]
  %v742 = vld [vmem:[%s3 + $0x448] sm:$0xff]
  %v743 = vld [vmem:[%s3 + $0x450] sm:$0xff]
  %v744 = vld [vmem:[%s3 + $0x458] sm:$0xff]
  %v745 = vld [vmem:[%s3 + $0x460] sm:$0xff]
  %v746 = vld [vmem:[%s3 + $0x468] sm:$0xff]
  %v747 = vld [vmem:[%s3 + $0x470] sm:$0xff]
  %v748 = vld [vmem:[%s3 + $0x478] sm:$0xff]
  %749 = vmatprep.subr.mxu0 0.0
  %750 = vmatpush1.msra.mxu0 %v605
  %751 = vmatprep.subr.mxu0 0.0
  %752 = vmatpush1.msra.mxu0 %v606
  %753 = vmatprep.subr.mxu0 0.0
  %754 = vmatpush1.msra.mxu0 %v607
  %755 = vmatprep.subr.mxu0 0.0
  %756 = vmatpush1.msra.mxu0 %v608
  %757 = vmatprep.subr.mxu0 0.0
  %758 = vmatpush1.msra.mxu0 %v609
  %759 = vmatprep.subr.mxu0 0.0
  %760 = vmatpush1.msra.mxu0 %v610
  %761 = vmatprep.subr.mxu0 0.0
  %762 = vmatpush1.msra.mxu0 %v611
  %763 = vmatprep.subr.mxu0 0.0
  %764 = vmatpush1.msra.mxu0 %v612
  %765 = vmatprep.subr.mxu0 0.0
  %766 = vmatpush1.msra.mxu0 %v613
  %767 = vmatprep.subr.mxu0 0.0
  %768 = vmatpush1.msra.mxu0 %v614
  %769 = vmatprep.subr.mxu0 0.0
  %770 = vmatpush1.msra.mxu0 %v615
  %771 = vmatprep.subr.mxu0 0.0
  %772 = vmatpush1.msra.mxu0 %v616
  %773 = vmatprep.subr.mxu0 0.0
  %774 = vmatpush1.msra.mxu0 %v617
  %775 = vmatprep.subr.mxu0 0.0
  %776 = vmatpush1.msra.mxu0 %v618
  %777 = vmatprep.subr.mxu0 0.0
  %778 = vmatpush1.msra.mxu0 %v619
  %779 = vmatprep.subr.mxu0 0.0
  %780 = vmatpush1.msra.mxu0 %v620
  %781 = vmatprep.subr.mxu0 0.0
  %782 = vmatpush1.msra.mxu0 %v621
  %783 = vmatprep.subr.mxu0 0.0
  %784 = vmatpush1.msra.mxu0 %v622
  %785 = vmatprep.subr.mxu0 0.0
  %786 = vmatpush1.msra.mxu0 %v623
  %787 = vmatprep.subr.mxu0 0.0
  %788 = vmatpush1.msra.mxu0 %v624
  %789 = vmatprep.subr.mxu0 0.0
  %790 = vmatpush1.msra.mxu0 %v625
  %791 = vmatprep.subr.mxu0 0.0
  %792 = vmatpush1.msra.mxu0 %v626
  %793 = vmatprep.subr.mxu0 0.0
  %794 = vmatpush1.msra.mxu0 %v627
  %795 = vmatprep.subr.mxu0 0.0
  %796 = vmatpush1.msra.mxu0 %v628
  %797 = vmatprep.subr.mxu0 0.0
  %798 = vmatpush1.msra.mxu0 %v629
  %799 = vmatprep.subr.mxu0 0.0
  %800 = vmatpush1.msra.mxu0 %v630
  %801 = vmatprep.subr.mxu0 0.0
  %802 = vmatpush1.msra.mxu0 %v631
  %803 = vmatprep.subr.mxu0 0.0
  %804 = vmatpush1.msra.mxu0 %v632
  %805 = vmatprep.subr.mxu0 0.0
  %806 = vmatpush1.msra.mxu0 %v633
  %807 = vmatprep.subr.mxu0 0.0
  %808 = vmatpush1.msra.mxu0 %v634
  %809 = vmatprep.subr.mxu0 0.0
  %810 = vmatpush1.msra.mxu0 %v635
  %811 = vmatprep.subr.mxu0 0.0
  %812 = vmatpush1.msra.mxu0 %v636
  %813 = vmatprep.mubr.f32.mxu0 %v570
  %814 = vmatmul.mubr.f32.gmra.mrb[0].mxu0 %v569
  %v815 = vpop.f32.mrb[0].mxu0
  %v816 = vadd.f32 0.0, %v815
  %v817 = vpop.f32.mrb[0].mxu0
  %818 = vmatprep.mubr.f32.mxu0 %v579
  %819 = vmatmul.mubr.f32.gmra.mrb[0].mxu0 %v578
  %v820 = vpop.f32.mrb[0].mxu0
  %v821 = vadd.f32 0.0, %v820
  %v822 = vpop.f32.mrb[0].mxu0
  %823 = vmatprep.mubr.f32.mxu0 %v588
  %824 = vmatmul.mubr.f32.gmra.mrb[0].mxu0 %v587
  %v825 = vpop.f32.mrb[0].mxu0
  %v826 = vadd.f32 0.0, %v825
  %v827 = vpop.f32.mrb[0].mxu0
  %828 = vmatprep.mubr.f32.mxu0 %v597
  %829 = vmatmul.mubr.f32.gmra.mrb[0].mxu0 %v596
  %v830 = vpop.f32.mrb[0].mxu0
  %v831 = vadd.f32 0.0, %v830
  %v832 = vpop.f32.mrb[0].mxu0
  %833 = vdwg.mxu0
  %834 = vmatprep.subr.mxu0 0.0
  %835 = vmatpush1.msra.mxu0 %v637
  %836 = vmatprep.subr.mxu0 0.0
  %837 = vmatpush1.msra.mxu0 %v638
  %838 = vmatprep.subr.mxu0 0.0
  %839 = vmatpush1.msra.mxu0 %v639
  %840 = vmatprep.subr.mxu0 0.0
  %841 = vmatpush1.msra.mxu0 %v640
  %842 = vmatprep.subr.mxu0 0.0
  %843 = vmatpush1.msra.mxu0 %v641
  %844 = vmatprep.subr.mxu0 0.0
  %845 = vmatpush1.msra.mxu0 %v642
  %846 = vmatprep.subr.mxu0 0.0
  %847 = vmatpush1.msra.mxu0 %v643
  %848 = vmatprep.subr.mxu0 0.0
  %849 = vmatpush1.msra.mxu0 %v644
  %850 = vmatprep.subr.mxu0 0.0
  %851 = vmatpush1.msra.mxu0 %v645
  %852 = vmatprep.subr.mxu0 0.0
  %853 = vmatpush1.msra.mxu0 %v646
  %854 = vmatprep.subr.mxu0 0.0
  %855 = vmatpush1.msra.mxu0 %v647
  %856 = vmatprep.subr.mxu0 0.0
  %857 = vmatpush1.msra.mxu0 %v648
  %858 = vmatprep.subr.mxu0 0.0
  %859 = vmatpush1.msra.mxu0 %v649
  %860 = vmatprep.subr.mxu0 0.0
  %861 = vmatpush1.msra.mxu0 %v650
  %862 = vmatprep.subr.mxu0 0.0
  %863 = vmatpush1.msra.mxu0 %v651
  %864 = vmatprep.subr.mxu0 0.0
  %865 = vmatpush1.msra.mxu0 %v652
  %866 = vmatprep.subr.mxu0 0.0
  %867 = vmatpush1.msra.mxu0 %v653
  %868 = vmatprep.subr.mxu0 0.0
  %869 = vmatpush1.msra.mxu0 %v654
  %870 = vmatprep.subr.mxu0 0.0
  %871 = vmatpush1.msra.mxu0 %v655
  %872 = vmatprep.subr.mxu0 0.0
  %873 = vmatpush1.msra.mxu0 %v656
  %874 = vmatprep.subr.mxu0 0.0
  %875 = vmatpush1.msra.mxu0 %v657
  %876 = vmatprep.subr.mxu0 0.0
  %877 = vmatpush1.msra.mxu0 %v658
  %878 = vmatprep.subr.mxu0 0.0
  %879 = vmatpush1.msra.mxu0 %v659
  %880 = vmatprep.subr.mxu0 0.0
  %881 = vmatpush1.msra.mxu0 %v660
  %882 = vmatprep.subr.mxu0 0.0
  %883 = vmatpush1.msra.mxu0 %v661
  %884 = vmatprep.subr.mxu0 0.0
  %885 = vmatpush1.msra.mxu0 %v662
  %886 = vmatprep.subr.mxu0 0.0
  %887 = vmatpush1.msra.mxu0 %v663
  %888 = vmatprep.subr.mxu0 0.0
  %889 = vmatpush1.msra.mxu0 %v664
  %890 = vmatprep.subr.mxu0 0.0
  %891 = vmatpush1.msra.mxu0 %v665
  %892 = vmatprep.subr.mxu0 0.0
  %893 = vmatpush1.msra.mxu0 %v666
  %894 = vmatprep.subr.mxu0 0.0
  %895 = vmatpush1.msra.mxu0 %v667
  %896 = vmatprep.subr.mxu0 0.0
  %897 = vmatpush1.msra.mxu0 %v668
  %898 = vmatprep.mubr.f32.mxu0 %v572
  %899 = vmatmul.mubr.f32.gmra.mrb[0].mxu0 %v571
  %v900 = vpop.f32.mrb[0].mxu0
  %v901 = vadd.f32 %v816, %v900
  %v902 = vpop.f32.mrb[0].mxu0
  %903 = vmatprep.mubr.f32.mxu0 %v581
  %904 = vmatmul.mubr.f32.gmra.mrb[0].mxu0 %v580
  %v905 = vpop.f32.mrb[0].mxu0
  %v906 = vadd.f32 %v821, %v905
  %v907 = vpop.f32.mrb[0].mxu0
  %908 = vmatprep.mubr.f32.mxu0 %v590
  %909 = vmatmul.mubr.f32.gmra.mrb[0].mxu0 %v589
  %v910 = vpop.f32.mrb[0].mxu0
  %v911 = vadd.f32 %v826, %v910
  %v912 = vpop.f32.mrb[0].mxu0
  %913 = vmatprep.mubr.f32.mxu0 %v599
  %914 = vmatmul.mubr.f32.gmra.mrb[0].mxu0 %v598
  %v915 = vpop.f32.mrb[0].mxu0
  %v916 = vadd.f32 %v831, %v915
  %v917 = vpop.f32.mrb[0].mxu0
  %918 = vdwg.mxu0
  %919 = vmatprep.subr.mxu0 0.0
  %920 = vmatpush1.msra.mxu0 %v669
  %921 = vmatprep.subr.mxu0 0.0
  %922 = vmatpush1.msra.mxu0 %v670
  %923 = vmatprep.subr.mxu0 0.0
  %924 = vmatpush1.msra.mxu0 %v671
  %925 = vmatprep.subr.mxu0 0.0
  %926 = vmatpush1.msra.mxu0 %v672
  %927 = vmatprep.subr.mxu0 0.0
  %928 = vmatpush1.msra.mxu0 %v673
  %929 = vmatprep.subr.mxu0 0.0
  %930 = vmatpush1.msra.mxu0 %v674
  %931 = vmatprep.subr.mxu0 0.0
  %932 = vmatpush1.msra.mxu0 %v675
  %933 = vmatprep.subr.mxu0 0.0
  %934 = vmatpush1.msra.mxu0 %v676
  %935 = vmatprep.subr.mxu0 0.0
  %936 = vmatpush1.msra.mxu0 %v677
  %937 = vmatprep.subr.mxu0 0.0
  %938 = vmatpush1.msra.mxu0 %v678
  %939 = vmatprep.subr.mxu0 0.0
  %940 = vmatpush1.msra.mxu0 %v679
  %941 = vmatprep.subr.mxu0 0.0
  %942 = vmatpush1.msra.mxu0 %v680
  %943 = vmatprep.subr.mxu0 0.0
  %944 = vmatpush1.msra.mxu0 %v681
  %945 = vmatprep.subr.mxu0 0.0
  %946 = vmatpush1.msra.mxu0 %v682
  %947 = vmatprep.subr.mxu0 0.0
  %948 = vmatpush1.msra.mxu0 %v683
  %949 = vmatprep.subr.mxu0 0.0
  %950 = vmatpush1.msra.mxu0 %v684
  %951 = vmatprep.subr.mxu0 0.0
  %952 = vmatpush1.msra.mxu0 %v685
  %953 = vmatprep.subr.mxu0 0.0
  %954 = vmatpush1.msra.mxu0 %v686
  %955 = vmatprep.subr.mxu0 0.0
  %956 = vmatpush1.msra.mxu0 %v687
  %957 = vmatprep.subr.mxu0 0.0
  %958 = vmatpush1.msra.mxu0 %v688
  %959 = vmatprep.subr.mxu0 0.0
  %960 = vmatpush1.msra.mxu0 %v689
  %961 = vmatprep.subr.mxu0 0.0
  %962 = vmatpush1.msra.mxu0 %v690
  %963 = vmatprep.subr.mxu0 0.0
  %964 = vmatpush1.msra.mxu0 %v691
  %965 = vmatprep.subr.mxu0 0.0
  %966 = vmatpush1.msra.mxu0 %v692
  %967 = vmatprep.subr.mxu0 0.0
  %968 = vmatpush1.msra.mxu0 %v693
  %969 = vmatprep.subr.mxu0 0.0
  %970 = vmatpush1.msra.mxu0 %v694
  %971 = vmatprep.subr.mxu0 0.0
  %972 = vmatpush1.msra.mxu0 %v695
  %973 = vmatprep.subr.mxu0 0.0
  %974 = vmatpush1.msra.mxu0 %v696
  %975 = vmatprep.subr.mxu0 0.0
  %976 = vmatpush1.msra.mxu0 %v697
  %977 = vmatprep.subr.mxu0 0.0
  %978 = vmatpush1.msra.mxu0 %v698
  %979 = vmatprep.subr.mxu0 0.0
  %980 = vmatpush1.msra.mxu0 %v699
  %981 = vmatprep.subr.mxu0 0.0
  %982 = vmatpush1.msra.mxu0 %v700
  %983 = vmatprep.mubr.f32.mxu0 %v574
  %984 = vmatmul.mubr.f32.gmra.mrb[0].mxu0 %v573
  %v985 = vpop.f32.mrb[0].mxu0
  %v986 = vadd.f32 %v901, %v985
  %v987 = vpop.f32.mrb[0].mxu0
  %988 = vmatprep.mubr.f32.mxu0 %v583
  %989 = vmatmul.mubr.f32.gmra.mrb[0].mxu0 %v582
  %v990 = vpop.f32.mrb[0].mxu0
  %v991 = vadd.f32 %v906, %v990
  %v992 = vpop.f32.mrb[0].mxu0
  %993 = vmatprep.mubr.f32.mxu0 %v592
  %994 = vmatmul.mubr.f32.gmra.mrb[0].mxu0 %v591
  %v995 = vpop.f32.mrb[0].mxu0
  %v996 = vadd.f32 %v911, %v995
  %v997 = vpop.f32.mrb[0].mxu0
  %998 = vmatprep.mubr.f32.mxu0 %v601
  %999 = vmatmul.mubr.f32.gmra.mrb[0].mxu0 %v600
  %v1000 = vpop.f32.mrb[0].mxu0
  %v1001 = vadd.f32 %v916, %v1000
  %v1002 = vpop.f32.mrb[0].mxu0
  %1003 = vdwg.mxu0
  %1004 = vmatprep.subr.mxu0 0.0
  %1005 = vmatpush1.msra.mxu0 %v701
  %1006 = vmatprep.subr.mxu0 0.0
  %1007 = vmatpush1.msra.mxu0 %v702
  %1008 = vmatprep.subr.mxu0 0.0
  %1009 = vmatpush1.msra.mxu0 %v703
  %1010 = vmatprep.subr.mxu0 0.0
  %1011 = vmatpush1.msra.mxu0 %v704
  %1012 = vmatprep.subr.mxu0 0.0
  %1013 = vmatpush1.msra.mxu0 %v705
  %1014 = vmatprep.subr.mxu0 0.0
  %1015 = vmatpush1.msra.mxu0 %v706
  %1016 = vmatprep.subr.mxu0 0.0
  %1017 = vmatpush1.msra.mxu0 %v707
  %1018 = vmatprep.subr.mxu0 0.0
  %1019 = vmatpush1.msra.mxu0 %v708
  %1020 = vmatprep.subr.mxu0 0.0
  %1021 = vmatpush1.msra.mxu0 %v709
  %1022 = vmatprep.subr.mxu0 0.0
  %1023 = vmatpush1.msra.mxu0 %v710
  %1024 = vmatprep.subr.mxu0 0.0
  %1025 = vmatpush1.msra.mxu0 %v711
  %1026 = vmatprep.subr.mxu0 0.0
  %1027 = vmatpush1.msra.mxu0 %v712
  %1028 = vmatprep.subr.mxu0 0.0
  %1029 = vmatpush1.msra.mxu0 %v713
  %1030 = vmatprep.subr.mxu0 0.0
  %1031 = vmatpush1.msra.mxu0 %v714
  %1032 = vmatprep.subr.mxu0 0.0
  %1033 = vmatpush1.msra.mxu0 %v715
  %1034 = vmatprep.subr.mxu0 0.0
  %1035 = vmatpush1.msra.mxu0 %v716
  %1036 = vmatprep.subr.mxu0 0.0
  %1037 = vmatpush1.msra.mxu0 %v717
  %1038 = vmatprep.subr.mxu0 0.0
  %1039 = vmatpush1.msra.mxu0 %v718
  %1040 = vmatprep.subr.mxu0 0.0
  %1041 = vmatpush1.msra.mxu0 %v719
  %1042 = vmatprep.subr.mxu0 0.0
  %1043 = vmatpush1.msra.mxu0 %v720
  %1044 = vmatprep.subr.mxu0 0.0
  %1045 = vmatpush1.msra.mxu0 %v721
  %1046 = vmatprep.subr.mxu0 0.0
  %1047 = vmatpush1.msra.mxu0 %v722
  %1048 = vmatprep.subr.mxu0 0.0
  %1049 = vmatpush1.msra.mxu0 %v723
  %1050 = vmatprep.subr.mxu0 0.0
  %1051 = vmatpush1.msra.mxu0 %v724
  %1052 = vmatprep.subr.mxu0 0.0
  %1053 = vmatpush1.msra.mxu0 %v725
  %1054 = vmatprep.subr.mxu0 0.0
  %1055 = vmatpush1.msra.mxu0 %v726
  %1056 = vmatprep.subr.mxu0 0.0
  %1057 = vmatpush1.msra.mxu0 %v727
  %1058 = vmatprep.subr.mxu0 0.0
  %1059 = vmatpush1.msra.mxu0 %v728
  %1060 = vmatprep.subr.mxu0 0.0
  %1061 = vmatpush1.msra.mxu0 %v729
  %1062 = vmatprep.subr.mxu0 0.0
  %1063 = vmatpush1.msra.mxu0 %v730
  %1064 = vmatprep.subr.mxu0 0.0
  %1065 = vmatpush1.msra.mxu0 %v731
  %1066 = vmatprep.subr.mxu0 0.0
  %1067 = vmatpush1.msra.mxu0 %v732
  %1068 = vmatprep.mubr.f32.mxu0 %v576
  %1069 = vmatmul.mubr.f32.gmra.mrb[0].mxu0 %v575
  %v1070 = vpop.f32.mrb[0].mxu0
  %v1071 = vadd.f32 %v986, %v1070
  %v1072 = vpop.f32.mrb[0].mxu0
  %1073 = vmatprep.mubr.f32.mxu0 %v585
  %1074 = vmatmul.mubr.f32.gmra.mrb[0].mxu0 %v584
  %v1075 = vpop.f32.mrb[0].mxu0
  %v1076 = vadd.f32 %v991, %v1075
  %v1077 = vpop.f32.mrb[0].mxu0
  %1078 = vmatprep.mubr.f32.mxu0 %v594
  %1079 = vmatmul.mubr.f32.gmra.mrb[0].mxu0 %v593
  %v1080 = vpop.f32.mrb[0].mxu0
  %v1081 = vadd.f32 %v996, %v1080
  %v1082 = vpop.f32.mrb[0].mxu0
  %1083 = vmatprep.mubr.f32.mxu0 %v603
  %1084 = vmatmul.mubr.f32.gmra.mrb[0].mxu0 %v602
  %v1085 = vpop.f32.mrb[0].mxu0
  %v1086 = vadd.f32 %v1001, %v1085
  %v1087 = vpop.f32.mrb[0].mxu0
  %1088 = vdwg.mxu0
  %1089 = vmatprep.subr.mxu0 0.0
  %1090 = vmatpush1.msra.mxu0 %v733
  %1091 = vmatprep.subr.mxu0 0.0
  %1092 = vmatpush1.msra.mxu0 %v734
  %1093 = vmatprep.subr.mxu0 0.0
  %1094 = vmatpush1.msra.mxu0 %v735
  %1095 = vmatprep.subr.mxu0 0.0
  %1096 = vmatpush1.msra.mxu0 %v736
  %1097 = vmatprep.subr.mxu0 0.0
  %1098 = vmatpush1.msra.mxu0 %v737
  %1099 = vmatprep.subr.mxu0 0.0
  %1100 = vmatpush1.msra.mxu0 %v738
  %1101 = vmatprep.subr.mxu0 0.0
  %1102 = vmatpush1.msra.mxu0 %v739
  %1103 = vmatprep.subr.mxu0 0.0
  %1104 = vmatpush1.msra.mxu0 %v740
  %1105 = vmatprep.subr.mxu0 0.0
  %1106 = vmatpush1.msra.mxu0 %v741
  %1107 = vmatprep.subr.mxu0 0.0
  %1108 = vmatpush1.msra.mxu0 %v742
  %1109 = vmatprep.subr.mxu0 0.0
  %1110 = vmatpush1.msra.mxu0 %v743
  %1111 = vmatprep.subr.mxu0 0.0
  %1112 = vmatpush1.msra.mxu0 %v744
  %1113 = vmatprep.subr.mxu0 0.0
  %1114 = vmatpush1.msra.mxu0 %v745
  %1115 = vmatprep.subr.mxu0 0.0
  %1116 = vmatpush1.msra.mxu0 %v746
  %1117 = vmatprep.subr.mxu0 0.0
  %1118 = vmatpush1.msra.mxu0 %v747
  %1119 = vmatprep.subr.mxu0 0.0
  %1120 = vmatpush1.msra.mxu0 %v748
  %1121 = vmatprep.subr.mxu0 0.0
  %1122 = vmatpush1.msra.mxu0 0.0
  %1123 = vmatprep.subr.mxu0 0.0
  %1124 = vmatpush1.msra.mxu0 0.0
  %1125 = vmatprep.subr.mxu0 0.0
  %1126 = vmatpush1.msra.mxu0 0.0
  %1127 = vmatprep.subr.mxu0 0.0
  %1128 = vmatpush1.msra.mxu0 0.0
  %1129 = vmatprep.subr.mxu0 0.0
  %1130 = vmatpush1.msra.mxu0 0.0
  %1131 = vmatprep.subr.mxu0 0.0
  %1132 = vmatpush1.msra.mxu0 0.0
  %1133 = vmatprep.subr.mxu0 0.0
  %1134 = vmatpush1.msra.mxu0 0.0
  %1135 = vmatprep.subr.mxu0 0.0
  %1136 = vmatpush1.msra.mxu0 0.0
  %1137 = vmatprep.subr.mxu0 0.0
  %1138 = vmatpush1.msra.mxu0 0.0
  %1139 = vmatprep.subr.mxu0 0.0
  %1140 = vmatpush1.msra.mxu0 0.0
  %1141 = vmatprep.subr.mxu0 0.0
  %1142 = vmatpush1.msra.mxu0 0.0
  %1143 = vmatprep.subr.mxu0 0.0
  %1144 = vmatpush1.msra.mxu0 0.0
  %1145 = vmatprep.subr.mxu0 0.0
  %1146 = vmatpush1.msra.mxu0 0.0
  %1147 = vmatprep.subr.mxu0 0.0
  %1148 = vmatpush1.msra.mxu0 0.0
  %1149 = vmatprep.subr.mxu0 0.0
  %1150 = vmatpush1.msra.mxu0 0.0
  %1151 = vmatprep.subr.mxu0 0.0
  %1152 = vmatpush1.msra.mxu0 0.0
  %1153 = vmatprep.mubr.f32.mxu0 0.0
  %1154 = vmatmul.mubr.f32.gmra.mrb[0].mxu0 %v577
  %v1155 = vpop.f32.mrb[0].mxu0
  %v1156 = vadd.f32 %v1071, %v1155
  %v1157 = vpop.f32.mrb[0].mxu0
  %1158 = vmatprep.mubr.f32.mxu0 0.0
  %1159 = vmatmul.mubr.f32.gmra.mrb[0].mxu0 %v586
  %v1160 = vpop.f32.mrb[0].mxu0
  %v1161 = vadd.f32 %v1076, %v1160
  %v1162 = vpop.f32.mrb[0].mxu0
  %1163 = vmatprep.mubr.f32.mxu0 0.0
  %1164 = vmatmul.mubr.f32.gmra.mrb[0].mxu0 %v595
  %v1165 = vpop.f32.mrb[0].mxu0
  %v1166 = vadd.f32 %v1081, %v1165
  %v1167 = vpop.f32.mrb[0].mxu0
  %1168 = vmatprep.mubr.f32.mxu0 0.0
  %1169 = vmatmul.mubr.f32.gmra.mrb[0].mxu0 %v604
  %v1170 = vpop.f32.mrb[0].mxu0
  %v1171 = vadd.f32 %v1086, %v1170
  %v1172 = vpop.f32.mrb[0].mxu0
  %1173 = vdwg.mxu0
  %v1174 = vld [vmem:[%s4] sm:$0x3]
  %v1175 = vld [vmem:[%s5] sm:$0x3]
  %1177 = vset.pattern.permute.xlu0 0
  %1178 = vperm.xlu0 %1177, %v1175
  %v1179 = vpop.permute.xlu0 %1178
  %vm1181 = vcmask 261120
  %v1183 = vsel %vm1181, %v1174, 0
  %1185 = vmatprep.subr.mxu0 0.0
  %1186 = vmatpush1.msra.mxu0 %v1156
  %1187 = vmatprep.subr.mxu0 0.0
  %1188 = vmatpush1.msra.mxu0 %v1161
  %1189 = vmatprep.subr.mxu0 0.0
  %1190 = vmatpush1.msra.mxu0 %v1166
  %1191 = vmatprep.subr.mxu0 0.0
  %1192 = vmatpush1.msra.mxu0 %v1171
  %1193 = vmatprep.subr.mxu0 0.0
  %1194 = vmatpush1.msra.mxu0 0.0
  %1195 = vmatprep.subr.mxu0 0.0
  %1196 = vmatpush1.msra.mxu0 0.0
  %1197 = vmatprep.subr.mxu0 0.0
  %1198 = vmatpush1.msra.mxu0 0.0
  %1199 = vmatprep.subr.mxu0 0.0
  %1200 = vmatpush1.msra.mxu0 0.0
  %1201 = vmatprep.subr.mxu0 0.0
  %1202 = vmatpush1.msra.mxu0 0.0
  %1203 = vmatprep.subr.mxu0 0.0
  %1204 = vmatpush1.msra.mxu0 0.0
  %1205 = vmatprep.subr.mxu0 0.0
  %1206 = vmatpush1.msra.mxu0 0.0
  %1207 = vmatprep.subr.mxu0 0.0
  %1208 = vmatpush1.msra.mxu0 0.0
  %1209 = vmatprep.subr.mxu0 0.0
  %1210 = vmatpush1.msra.mxu0 0.0
  %1211 = vmatprep.subr.mxu0 0.0
  %1212 = vmatpush1.msra.mxu0 0.0
  %1213 = vmatprep.subr.mxu0 0.0
  %1214 = vmatpush1.msra.mxu0 0.0
  %1215 = vmatprep.subr.mxu0 0.0
  %1216 = vmatpush1.msra.mxu0 0.0
  %1217 = vmatprep.subr.mxu0 0.0
  %1218 = vmatpush1.msra.mxu0 0.0
  %1219 = vmatprep.subr.mxu0 0.0
  %1220 = vmatpush1.msra.mxu0 0.0
  %1221 = vmatprep.subr.mxu0 0.0
  %1222 = vmatpush1.msra.mxu0 0.0
  %1223 = vmatprep.subr.mxu0 0.0
  %1224 = vmatpush1.msra.mxu0 0.0
  %1225 = vmatprep.subr.mxu0 0.0
  %1226 = vmatpush1.msra.mxu0 0.0
  %1227 = vmatprep.subr.mxu0 0.0
  %1228 = vmatpush1.msra.mxu0 0.0
  %1229 = vmatprep.subr.mxu0 0.0
  %1230 = vmatpush1.msra.mxu0 0.0
  %1231 = vmatprep.subr.mxu0 0.0
  %1232 = vmatpush1.msra.mxu0 0.0
  %1233 = vmatprep.subr.mxu0 0.0
  %1234 = vmatpush1.msra.mxu0 0.0
  %1235 = vmatprep.subr.mxu0 0.0
  %1236 = vmatpush1.msra.mxu0 0.0
  %1237 = vmatprep.subr.mxu0 0.0
  %1238 = vmatpush1.msra.mxu0 0.0
  %1239 = vmatprep.subr.mxu0 0.0
  %1240 = vmatpush1.msra.mxu0 0.0
  %1241 = vmatprep.subr.mxu0 0.0
  %1242 = vmatpush1.msra.mxu0 0.0
  %1243 = vmatprep.subr.mxu0 0.0
  %1244 = vmatpush1.msra.mxu0 0.0
  %1245 = vmatprep.subr.mxu0 0.0
  %1246 = vmatpush1.msra.mxu0 0.0
  %1247 = vmatprep.subr.mxu0 0.0
  %1248 = vmatpush1.msra.mxu0 0.0
  %1249 = vmatprep.mubr.f32.mxu0 0.0
  %1250 = vmatmul.mubr.f32.gmra.mrb[0].mxu0 %v1183
  %v1251 = vpop.f32.mrb[0].mxu0
  %v1252 = vadd.f32 %v1179, %v1251
  %v1253 = vpop.f32.mrb[0].mxu0
  %1254 = vdwg.mxu0
  %vm1255 = vcmask 9216
  %1256 = vst.msk [vmem:[%s6] sm:$0x3] %vm1255, %v1252
  // Predicated region
  $region26: #{equicnn_forward.1} parent=0 // pred_check
    _
  $region27: #{equicnn_forward.1} parent=0 // pred_check_branch
    %1258 = sbr.rel (0) target = $region29
  $region28: #{equicnn_forward.1} parent=0 // pred_region
    _
  $region29: #{equicnn_forward.1} parent=0 // pred_fallthru
    _
  // Predicated region
  $region30: #{equicnn_forward.1} parent=0 // pred_check
    _
  $region31: #{equicnn_forward.1} parent=0 // pred_check_branch
    %1260 = sbr.rel (0) target = $region33
  $region32: #{equicnn_forward.1} parent=0 // pred_region
    _
  $region33: #{equicnn_forward.1} parent=0 // pred_fallthru
    _

</llo_original>
